<compile_context>
chip_gen: v6e
topology: v6e:2x2x1
jax: 0.10.0
libtpu: 0.0.40
codegen_flags: <defaults>
</compile_context>

<pallas_src>
import numpy as np
import jax
import jax.numpy as jnp
from jax.experimental import pallas as pl
from jax.experimental.pallas import tpu as pltpu

LANES = 128
ROW_UNIT = 16          # sublane multiple safe for f32 and packed bf16/f16
MAX_TILE_ROWS = 1024   # 1024 x 128 x 4B = 512 KiB per f32 buffer


def _make_loss_kernel(gan_type, target_val, scale, n_valid, tr, needs_mask):
    """Build a kernel specialized for one (gan_type, target, shape) combo.

    x_ref   : VMEM (tr, 128)  native dtype  lane-dense slab of flattened input
    out_ref : VMEM (1, 1)     f32           scalar loss (written on last step)
    acc_ref : VMEM (8, 128)   f32           vreg-shaped running partial sums
    """

    def kernel(x_ref, out_ref, acc_ref):
        i = pl.program_id(0)

        @pl.when(i == 0)
        def _init():
            acc_ref[...] = jnp.zeros_like(acc_ref)

        x = x_ref[...].astype(jnp.float32)  # (tr, 128)

        if gan_type == "lsgan":
            d = x - jnp.float32(target_val)
            vals = d * d
        elif gan_type == "vanilla":
            # Numerically-stable BCE-with-logits (same form PyTorch uses):
            #   max(x, 0) - x*y + log1p(exp(-|x|))
            y = jnp.float32(target_val)
            vals = (jnp.maximum(x, 0.0) - x * y
                    + jnp.log1p(jnp.exp(-jnp.abs(x))))
        else:  # 'wgan-gp': signed mean of x; sign folded into `scale`
            vals = x

        if needs_mask:
            # Zero out the flat-tail padding (only emitted when padding exists).
            row = jax.lax.broadcasted_iota(jnp.int32, (tr, LANES), 0)
            col = jax.lax.broadcasted_iota(jnp.int32, (tr, LANES), 1)
            flat_idx = (i * tr + row) * LANES + col
            vals = jnp.where(flat_idx < n_valid, vals, 0.0)

        # Reduce the (tr,128) block vreg-by-vreg onto an (8,128) accumulator.
        # This is pure VPU work; the cross-lane reduce happens once at the end.
        acc_ref[...] += jnp.sum(vals.reshape(tr // 8, 8, LANES), axis=0)

        @pl.when(i == pl.num_programs(0) - 1)
        def _finalize():
            out_ref[...] = (jnp.sum(acc_ref[...])
                            * jnp.float32(scale)).reshape(1, 1)

    return kernel


class GANLossPallas:
    """Pallas equivalent of the PyTorch GANLoss module's forward pass."""

    def __init__(self, gan_type, real_label_val=1.0, fake_label_val=0.0):
        self.gan_type = gan_type.lower()
        if self.gan_type not in ("vanilla", "lsgan", "wgan-gp"):
            raise NotImplementedError(
                "GAN type [%s] is not found" % self.gan_type)
        self.real_label_val = float(real_label_val)
        self.fake_label_val = float(fake_label_val)

    def __call__(self, x, target_is_real):
        x_flat = jnp.ravel(x)
        if not jnp.issubdtype(x_flat.dtype, jnp.floating):
            x_flat = x_flat.astype(jnp.float32)
        n = int(x_flat.shape[0])

        # Lane-dense 2D layout: (rows, 128), tile height a multiple of 16.
        rows = -(-n // LANES)
        tr = min(MAX_TILE_ROWS, -(-rows // ROW_UNIT) * ROW_UNIT)
        rows_pad = -(-rows // tr) * tr
        total = rows_pad * LANES
        needs_mask = total != n
        if needs_mask:
            x_flat = jnp.pad(x_flat, (0, total - n))
        x2d = x_flat.reshape(rows_pad, LANES)

        if self.gan_type == "wgan-gp":
            target_val = 0.0  # unused
            scale = (-1.0 if target_is_real else 1.0) / n
        else:
            target_val = (self.real_label_val if target_is_real
                          else self.fake_label_val)
            scale = 1.0 / n

        kernel = _make_loss_kernel(
            self.gan_type, target_val, scale, n, tr, needs_mask)

        out = pl.pallas_call(
            kernel,
            out_shape=jax.ShapeDtypeStruct((1, 1), jnp.float32),
            grid_spec=pltpu.PrefetchScalarGridSpec(
                num_scalar_prefetch=0,
                grid=(rows_pad // tr,),
                in_specs=[pl.BlockSpec((tr, LANES), lambda i: (i, 0))],
                out_specs=pl.BlockSpec((1, 1), lambda i: (0, 0)),
                scratch_shapes=[pltpu.VMEM((8, LANES), jnp.float32)],
            ),
            compiler_params=pltpu.CompilerParams(
                # Sequential accumulation across the (single) reduction axis.
                dimension_semantics=("arbitrary",),
            ),
        )(x2d)
        return out[0, 0]


def _reference(gan_type, x, target_is_real, real_val=1.0, fake_val=0.0):
    """Plain-JAX reference with the same math as the PyTorch module."""
    x = x.astype(jnp.float32)
    if gan_type == "wgan-gp":
        return -jnp.mean(x) if target_is_real else jnp.mean(x)
    y = jnp.full_like(x, real_val if target_is_real else fake_val)
    if gan_type == "lsgan":
        return jnp.mean((x - y) ** 2)
    # vanilla: BCEWithLogitsLoss
    return jnp.mean(jnp.maximum(x, 0.0) - x * y
                    + jnp.log1p(jnp.exp(-jnp.abs(x))))


if __name__ == "__main__":
    key = jax.random.PRNGKey(0)
    B, C, H, W = 2, 4, 16, 16   # discriminator-output-like logits
    x = jax.random.normal(key, (B, C, H, W), dtype=jnp.float32)

    for gan_type in ("vanilla", "lsgan", "wgan-gp"):
        loss_mod = GANLossPallas(gan_type)
        for target_is_real in (True, False):
            got = loss_mod(x, target_is_real)
            got = jax.block_until_ready(got)
            want = _reference(gan_type, x, target_is_real)
            np.testing.assert_allclose(
                np.asarray(got), np.asarray(want), rtol=1e-5, atol=1e-5)

    print("KERNEL_OK")
</pallas_src>

<mosaic_0001>
module attributes {stable_mosaic.version = 11 : i64} {
  func.func @kernel(%arg0: i32, %arg1: memref<16x128xf32, #tpu.memory_space<vmem>>, %arg2: memref<1x1xf32, #tpu.memory_space<vmem>>, %arg3: memref<8x128xf32, #tpu.memory_space<vmem>>) attributes {dimension_semantics = [#tpu.dimension_semantics<arbitrary>], iteration_bounds = array<i64: 1>, scalar_prefetch = 0 : i64, scratch_operands = 1 : i64, tpu.core_type = #tpu.core_type<tc>, window_params = [{transform_indices = @transform_0, window_bounds = array<i64: 16, 128>}, {pipeline_mode = #tpu.pipeline_mode<synchronous>, transform_indices = @transform_1, window_bounds = array<i64: 1, 1>}]} {
    %c0_i32 = arith.constant 0 : i32
    %0 = arith.cmpi eq, %arg0, %c0_i32 : i32
    %1 = arith.extui %0 : i1 to i32
    %c0_i32_0 = arith.constant 0 : i32
    %2 = arith.cmpi ne, %1, %c0_i32_0 : i32
    scf.if %2 {
      %cst_11 = arith.constant 0.000000e+00 : f32
      %23 = vector.broadcast %cst_11 : f32 to vector<8x128xf32>
      %c0_12 = arith.constant 0 : index
      %c0_13 = arith.constant 0 : index
      %24 = vector.load %arg3[%c0_12, %c0_13] : memref<8x128xf32, #tpu.memory_space<vmem>>, vector<8x128xf32>
      tpu.vector_store %arg3[%c0_12, %c0_13], %23 {strides = array<i32>} : memref<8x128xf32, #tpu.memory_space<vmem>>, vector<8x128xf32>,
    } else {
    }
    %c0 = arith.constant 0 : index
    %c0_1 = arith.constant 0 : index
    %3 = vector.load %arg1[%c0, %c0_1] : memref<16x128xf32, #tpu.memory_space<vmem>>, vector<16x128xf32>
    %cst = arith.constant 0.000000e+00 : f32
    %4 = vector.broadcast %cst : f32 to vector<16x128xf32>
    %5 = arith.maximumf %3, %4 : vector<16x128xf32>
    %cst_2 = arith.constant 1.000000e+00 : f32
    %6 = vector.broadcast %cst_2 : f32 to vector<16x128xf32>
    %7 = arith.mulf %3, %6 : vector<16x128xf32>
    %8 = arith.subf %5, %7 : vector<16x128xf32>
    %9 = math.absf %3 : vector<16x128xf32>
    %cst_3 = arith.constant 0.000000e+00 : f32
    %10 = vector.broadcast %cst_3 : f32 to vector<16x128xf32>
    %11 = arith.subf %10, %9 : vector<16x128xf32>
    %12 = math.exp %11 : vector<16x128xf32>
    %13 = math.log1p %12 : vector<16x128xf32>
    %14 = arith.addf %8, %13 : vector<16x128xf32>
    %c0_4 = arith.constant 0 : index
    %c0_5 = arith.constant 0 : index
    %15 = vector.load %arg3[%c0_4, %c0_5] : memref<8x128xf32, #tpu.memory_space<vmem>>, vector<8x128xf32>
    %16 = vector.shape_cast %14 : vector<16x128xf32> to vector<2x8x128xf32>
    %cst_6 = arith.constant dense<0.000000e+00> : vector<8x128xf32>
    %17 = vector.multi_reduction <add>, %16, %cst_6 [0] : vector<2x8x128xf32> to vector<8x128xf32>
    %18 = arith.addf %15, %17 : vector<8x128xf32>
    %c0_7 = arith.constant 0 : index
    %c0_8 = arith.constant 0 : index
    %19 = vector.load %arg3[%c0_7, %c0_8] : memref<8x128xf32, #tpu.memory_space<vmem>>, vector<8x128xf32>
    tpu.vector_store %arg3[%c0_7, %c0_8], %18 {strides = array<i32>} : memref<8x128xf32, #tpu.memory_space<vmem>>, vector<8x128xf32>,
    %c0_i32_9 = arith.constant 0 : i32
    %20 = arith.cmpi eq, %arg0, %c0_i32_9 : i32
    %21 = arith.extui %20 : i1 to i32
    %c0_i32_10 = arith.constant 0 : i32
    %22 = arith.cmpi ne, %21, %c0_i32_10 : i32
    scf.if %22 {
      %c0_11 = arith.constant 0 : index
      %c0_12 = arith.constant 0 : index
      %23 = vector.load %arg3[%c0_11, %c0_12] : memref<8x128xf32, #tpu.memory_space<vmem>>, vector<8x128xf32>
      %24 = vector.shape_cast %23 : vector<8x128xf32> to vector<1x8x128xf32>
      %cst_13 = arith.constant dense<0.000000e+00> : vector<1xf32>
      %25 = vector.multi_reduction <add>, %24, %cst_13 [1, 2] : vector<1x8x128xf32> to vector<1xf32>
      %26 = vector.shape_cast %25 : vector<1xf32> to vector<1x1x1xf32>
      %27 = vector.extract %26[0, 0, 0] : f32 from vector<1x1x1xf32>
      %cst_14 = arith.constant 4.8828125E-4 : f32
      %28 = arith.mulf %27, %cst_14 : f32
      %29 = vector.broadcast %28 : f32 to vector<1x1xf32>
      %c0_15 = arith.constant 0 : index
      %c0_16 = arith.constant 0 : index
      %30 = vector.load %arg2[%c0_15, %c0_16] : memref<1x1xf32, #tpu.memory_space<vmem>>, vector<1x1xf32>
      tpu.vector_store %arg2[%c0_15, %c0_16], %29 {strides = array<i32>} : memref<1x1xf32, #tpu.memory_space<vmem>>, vector<1x1xf32>,
    } else {
    }
    return
  }
  func.func @transform_0(%arg0: i32) -> (i32, i32) {
    %c0_i32 = arith.constant 0 : i32
    %c0_i32_0 = arith.constant 0 : i32
    return %arg0, %c0_i32 : i32, i32
  }
  func.func @transform_1(%arg0: i32) -> (i32, i32) {
    %c0_i32 = arith.constant 0 : i32
    %c0_i32_0 = arith.constant 0 : i32
    %c0_i32_1 = arith.constant 0 : i32
    return %c0_i32, %c0_i32_0 : i32, i32
  }
}

</mosaic_0001>

<llo_original>
// kernel: tpu_custom_call.1
$region0: #{tpu_custom_call.1}
  #allocation0 [shape = 'u32[]', space=smem, size = 0x4, offset = 0x4, fixed_abs, tag = 'smem constant byte address 0x4 - core index']
  #allocation1 [shape = 'u32[144,128]{1,0:T(1,128)}', space=vmem, size = 0x12000, scoped, tag = 'internal scratch']
  #allocation2 [shape = 'f32[8,128]{1,0:T(8,128)}', space=vmem, size = 0x1000, scoped, tag = 'scratch operand']
  %s0 = inlined_call_operand.hbm [shape: f32[16,128], index: 0, kind: input, shape index: {}]
  %s1 = inlined_call_operand.hbm [shape: f32[1,1], index: 1, kind: output, shape index: {}]
  %s2 = sld [smem:[#allocation0]]
  $region26: #{tpu_custom_call.1} parent=0
    _
  %s4 = ssub.s32 1, %s2
  %s5 = scalar_select 0, %s4, %s2
  $region1: #{tpu_custom_call.1} parent=0
    #allocation3 [shape = 'u8[8192]{0}', space=vmem, size = 0x2000, scoped, tag = 'input window, operand 0, single buffered']
    #allocation4 [shape = 's32[1]{0}', space=sflag, size = 0x4, scoped, tag = 'scoped memory for tpu_custom_call.1']
    #allocation5 [shape = 's32[1]{0}', space=sflag, size = 0x4, scoped, tag = 'scoped memory for tpu_custom_call.1']
    #allocation6 [shape = 'u8[512]{0}', space=vmem, size = 0x400, scoped, tag = 'output window, operand 0, single buffered']
    %6 = vsyncpa [#allocation4], 0
    %7 = vsyncpa [#allocation5], 0
    // Predicated region
    $region2: #{tpu_custom_call.1} parent=1 // pred_check
      _
    $region3: #{tpu_custom_call.1} parent=1 // pred_check_branch
      %9 = sbr.rel (0) target = $region5
    $region4: #{tpu_custom_call.1} parent=1 // pred_region
      %s11 = ssub.s32 256, 256
      %12 = vsyncadd [#allocation4], %s11
      %s13 = sshll.u32 [#allocation3], 4
      %s14 = int_to_ptr.vmem [resolvable:$true] %s13
      %19 = dma.hbm_to_vmem [thread:$0]  %s0, 256, %s14, [#allocation4], 128, 128, 8
    $region5: #{tpu_custom_call.1} parent=1 // pred_fallthru
      _
    // Predicated region
    $region6: #{tpu_custom_call.1} parent=1 // pred_check
      _
    $region7: #{tpu_custom_call.1} parent=1 // pred_check_branch
      %21 = sbr.rel (0) target = $region9
    $region8: #{tpu_custom_call.1} parent=1 // pred_region
      %22 = dma.done [#allocation4], 256
    $region9: #{tpu_custom_call.1} parent=1 // pred_fallthru
      _
    %p23 = scmp.eq.s32.totalorder 0, 0
    // Predicated region
    $region10: #{tpu_custom_call.1} parent=1 // pred_check
      %p24 = pneg %p23
    $region11: #{tpu_custom_call.1} parent=1 // pred_check_branch
      %26 = sbr.rel (%p24) target = $region13
    $region12: #{tpu_custom_call.1} parent=1 // pred_region
      %27 = vst [vmem:[#allocation2] sm:$0xff] 0.0
    $region13: #{tpu_custom_call.1} parent=1 // pred_fallthru
      _
    %v28 = vld [vmem:[#allocation3] sm:$0xff]
    %v29 = vld [vmem:[#allocation3 + $0x8] sm:$0xff]
    %v30 = vmax.f32 %v28, 0.0
    %v31 = vmax.f32 %v29, 0.0
    %v32 = vsub.f32 %v30, %v28
    %v33 = vsub.f32 %v31, %v29
    %v34 = vand.u32 2147483647, %v28
    %v35 = vand.u32 2147483647, %v29
    %v36 = vsub.f32 0.0, %v34
    %v37 = vsub.f32 0.0, %v35
    %v38 = vmul.f32 %v36, 1.442695
    %v39 = vpow.pop %v38
    %v40 = vmul.f32 %v37, 1.442695
    %v41 = vpow.pop %v40
    %v42 = vadd.f32 %v39, 1.0
    %v43 = vlog2.pop %v42
    %v44 = vmul.f32 %v43, 0.6931472
    %v45 = vmul.f32 -0.5, %v39
    %v46 = vadd.f32 %v45, 1.0
    %v47 = vmul.f32 %v46, %v39
    %v48 = vand.u32 2147483647, %v39
    %vm49 = vcmp.lt.f32.partialorder %v48, 0.0004427343
    %v50 = vsel %vm49, %v47, %v44
    %v51 = vadd.f32 %v41, 1.0
    %v52 = vlog2.pop %v51
    %v53 = vmul.f32 %v52, 0.6931472
    %v54 = vmul.f32 -0.5, %v41
    %v55 = vadd.f32 %v54, 1.0
    %v56 = vmul.f32 %v55, %v41
    %v57 = vand.u32 2147483647, %v41
    %vm58 = vcmp.lt.f32.partialorder %v57, 0.0004427343
    %v59 = vsel %vm58, %v56, %v53
    %v60 = vadd.f32 %v32, %v50
    %v61 = vadd.f32 %v33, %v59
    %v62 = vld [vmem:[#allocation2] sm:$0xff]
    %v63 = vadd.f32 %v60, %v61
    %v64 = vadd.f32 %v62, %v63
    %65 = vst [vmem:[#allocation2] sm:$0xff] %v64
    // Predicated region
    $region14: #{tpu_custom_call.1} parent=1 // pred_check
      %p66 = pneg %p23
    $region15: #{tpu_custom_call.1} parent=1 // pred_check_branch
      %68 = sbr.rel (%p66) target = $region17
    $region16: #{tpu_custom_call.1} parent=1 // pred_region
      %v69 = vld [vmem:[#allocation2] sm:$0xff]
      %70 = vadd.xlane.f32.xlu0 %v69
      %v71 = vpop.xlane.xlu0 %70
      %v72 = vrot.slane %v71, 4
      %v73 = vadd.f32 %v71, %v72
      %v74 = vrot.slane %v73, 2
      %v75 = vadd.f32 %v73, %v74
      %v76 = vrot.slane %v75, 1
      %v77 = vadd.f32 %v75, %v76
      %s78 = vtos %v77
      %s79 = smul.f32 %s78, 0.00048828125
      %v80 = vstv %s79
      %vm81 = vcmask 0
      %82 = vst.msk [vmem:[#allocation6] sm:$0x1] %vm81, %v80
    $region17: #{tpu_custom_call.1} parent=1 // pred_fallthru
      _
    // Predicated region
    $region18: #{tpu_custom_call.1} parent=1 // pred_check
      _
    $region19: #{tpu_custom_call.1} parent=1 // pred_check_branch
      %84 = sbr.rel (0) target = $region21
    $region20: #{tpu_custom_call.1} parent=1 // pred_region
      %s86 = ssub.s32 16, 16
      %87 = vsyncadd [#allocation5], %s86
      %s89 = sshll.u32 [#allocation6], 4
      %s90 = int_to_ptr.vmem [resolvable:$true] %s89
      %92 = dma.vmem_to_hbm [thread:$0]  %s90, 16, %s1, [#allocation5]
    $region21: #{tpu_custom_call.1} parent=1 // pred_fallthru
      _
    // Predicated region
    $region22: #{tpu_custom_call.1} parent=1 // pred_check
      _
    $region23: #{tpu_custom_call.1} parent=1 // pred_check_branch
      %94 = sbr.rel (0) target = $region25
    $region24: #{tpu_custom_call.1} parent=1 // pred_region
      %95 = dma.done [#allocation5], 16
    $region25: #{tpu_custom_call.1} parent=1 // pred_fallthru
      _
    %96 = vsyncpa [#allocation4], 1
    %97 = vsyncpa [#allocation5], 1

</llo_original>
